<compile_context>
chip_gen: v5e
topology: v5e:2x2
jax: 0.10.0
libtpu: 0.0.40
codegen_flags: <defaults>
</compile_context>

<pallas_src>
import functools

import jax
import jax.numpy as jnp
import numpy as np
from jax import lax
from jax.experimental import pallas as pl
from jax.experimental.pallas import tpu as pltpu


# ---------------------------------------------------------------------------
# Generation-aware tuning knobs
# ---------------------------------------------------------------------------
def _tpu_tuning():
    """VMEM budget/limit, #TensorCores and slab-vs-DMA bias per TPU generation."""
    try:
        kind = jax.devices()[0].device_kind.lower()
    except Exception:  # pragma: no cover - defensive
        kind = ""
    # Conservative default == v7x-like: 64 MiB physical VMEM, 2 TCs, fast HBM
    # (3.2 TB/s) -> bias toward the coalesced slab path, keep VMEM tight.
    cfg = dict(vmem_budget=12 << 20, vmem_limit=32 << 20, two_tc=True,
               slab_ratio=0.125, small_row_bytes=2048)
    if "v7" in kind:
        pass
    elif "v6" in kind:
        # v6e: 128 MiB VMEM, 1 TC, ~1.4 TB/s HBM -> big blocks, fewer steps.
        cfg.update(vmem_budget=48 << 20, vmem_limit=80 << 20, two_tc=False,
                   slab_ratio=0.25)
    elif "v5e" in kind or "v5 lite" in kind or "v5litepod" in kind:
        # v5e: 128 MiB VMEM, 1 TC, ~0.8 TB/s HBM -> the row-skipping DMA
        # gather pays off soonest; still use big blocks.
        cfg.update(vmem_budget=48 << 20, vmem_limit=64 << 20, two_tc=False,
                   slab_ratio=0.25)
    return cfg


def _even_steps(n_rows, bt, two_tc):
    """Clamp bt; on 2-TC parts keep >=2 (ideally an even number of) steps."""
    bt = max(1, min(bt, n_rows))
    if two_tc and n_rows > 1:
        bt = min(bt, pl.cdiv(n_rows, 2))          # both TensorCores get work
        steps = pl.cdiv(n_rows, bt)
        if steps > 1 and steps % 2 == 1:          # balance the two cores
            bt = max(1, pl.cdiv(n_rows, steps + 1))
    return bt


def _slab_block_rows(n, s, l, h, itemsize, budget, two_tc):
    # double-buffered reps slab + double-buffered out block + f32 one-hot.
    per_row = 2 * s * h * itemsize + 2 * l * h * itemsize + l * s * 4 + 2 * l * 4
    return _even_steps(n, max(1, budget // per_row), two_tc)


def _dma_block_rows(n, s, l, h, itemsize, budget, two_tc):
    per_row = 2 * l * h * itemsize                # double-buffered out block
    bt = max(1, budget // per_row)
    bt = min(bt, max(1, 256 // max(1, l)))        # bound the unrolled DMA count
    return _even_steps(n, bt, two_tc)


def _choose_path(s, l, h, itemsize, dtype, cfg, path):
    if path != "auto":
        return path
    if not jnp.issubdtype(dtype, jnp.floating):
        return "dma"                               # one-hot MXU gather wants floats
    row_bytes = h * itemsize
    if row_bytes < cfg["small_row_bytes"] or l >= s * cfg["slab_ratio"]:
        return "slab"                              # descriptor-issue-bound regime
    return "dma"                                   # large rows, L << S (v5e-friendly)


# ---------------------------------------------------------------------------
# Path 1: coalesced slab load + one-hot MXU gather
# ---------------------------------------------------------------------------
def _gather_slab_kernel(idx_ref, reps_ref, out_ref):
    # idx_ref : VMEM (1, bt, L) int32   word-start indices for this batch tile
    # reps_ref: VMEM (bt, S, H)         auto-pipelined reps slab
    # out_ref : VMEM (bt, L, H)
    bt, s, _ = reps_ref.shape
    l = out_ref.shape[1]
    idx = idx_ref[0]                                              # (bt, L)
    pos = lax.broadcasted_iota(jnp.int32, (bt, l, s), 2)          # lane iota
    onehot = (idx[:, :, None] == pos).astype(reps_ref.dtype)      # (bt, L, S)
    # Gather == one-hot matmul on the otherwise idle MXU.  The one-hot is
    # exactly 0/1 so the result equals the selected rows (f32 accumulate).
    out = jnp.einsum("bls,bsh->blh", onehot, reps_ref[...],
                     preferred_element_type=jnp.float32)
    out_ref[...] = out.astype(out_ref.dtype)


def _extract_slab(reps, idx1d, bt, vmem_limit):
    n, s, h = reps.shape
    l = idx1d.shape[0] // n
    nblk = pl.cdiv(n, bt)
    pad = nblk * bt * l - idx1d.shape[0]
    idx3d = jnp.pad(idx1d, (0, pad)).reshape(nblk, bt, l)
    return pl.pallas_call(
        _gather_slab_kernel,
        out_shape=jax.ShapeDtypeStruct((n, l, h), reps.dtype),
        grid_spec=pltpu.PrefetchScalarGridSpec(
            num_scalar_prefetch=0,
            grid=(nblk,),
            in_specs=[
                pl.BlockSpec((1, bt, l), lambda b: (b, 0, 0)),
                pl.BlockSpec((bt, s, h), lambda b: (b, 0, 0)),
            ],
            out_specs=pl.BlockSpec((bt, l, h), lambda b: (b, 0, 0)),
        ),
        compiler_params=pltpu.CompilerParams(
            dimension_semantics=("parallel",),
            vmem_limit_bytes=vmem_limit,
        ),
    )(idx3d, reps)


# ---------------------------------------------------------------------------
# Path 2: row-skipping DMA gather (reps stay in HBM, only selected rows move)
# ---------------------------------------------------------------------------
def _gather_dma_kernel(idx_ref, reps_hbm, out_ref, copy_sem, *, idx_is_blocked):
    # idx_ref : SMEM (1, bt*L) int32 block   (or flat (N*L,) when prefetched)
    # reps_hbm: HBM ref (N, S, H)            (memory_space=pl.ANY, no auto-DMA)
    # out_ref : VMEM (bt, L, H)
    # copy_sem: single DMA semaphore shared by all row copies of this step
    bt, l, _ = out_ref.shape
    n = reps_hbm.shape[0]
    b0 = pl.multiple_of(pl.program_id(0) * bt, bt)

    # Issue all bt*L single-row HBM->VMEM copies (statically unrolled; bt*L is
    # bounded in the wrapper).  For cdiv-tail blocks the batch row is clamped
    # to N-1; the duplicate rows land in out_ref rows whose HBM writeback is
    # masked out, and keeping the copy count fixed lets one aggregated wait
    # drain the semaphore exactly.  All copies are identical (1, H) rows, a
    # requirement for sharing a single DMA semaphore.
    for j in range(bt):
        b = jnp.minimum(b0 + j, n - 1)
        for i in range(l):
            if idx_is_blocked:
                row = idx_ref[0, j * l + i]
            else:
                row = idx_ref[b * l + i]
            pltpu.make_async_copy(
                reps_hbm.at[b, pl.ds(row, 1), :],     # (1, H) row in HBM
                out_ref.at[j, pl.ds(i, 1), :],        # (1, H) slot in VMEM
                copy_sem,
            ).start()

    # Aggregated wait: the bt*L copies tile out_ref exactly once, so a single
    # wait sized as the whole block drains the semaphore (paged-attention
    # MultiPageAsyncCopyDescriptor idiom) instead of bt*L serialized waits.
    pltpu.make_async_copy(out_ref, out_ref, copy_sem).wait()


def _extract_dma(reps, idx1d, bt, vmem_limit, idx_is_blocked):
    n, s, h = reps.shape
    l = idx1d.shape[0] // n
    nblk = pl.cdiv(n, bt)
    kernel = functools.partial(_gather_dma_kernel, idx_is_blocked=idx_is_blocked)
    reps_spec = pl.BlockSpec(memory_space=pl.ANY)          # reps stay in HBM
    out_spec = pl.BlockSpec((bt, l, h), lambda b, *_: (b, 0, 0))
    if idx_is_blocked:
        pad = nblk * bt * l - idx1d.shape[0]
        idx_arg = jnp.pad(idx1d, (0, pad)).reshape(nblk, bt * l)
        num_scalar_prefetch = 0
        in_specs = [
            pl.BlockSpec((1, bt * l), lambda b: (b, 0),
                         memory_space=pltpu.MemorySpace.SMEM),
            reps_spec,
        ]
    else:
        # Fallback: scalar-prefetch the whole flat index (pins N*L ints in SMEM).
        idx_arg = idx1d
        num_scalar_prefetch = 1
        in_specs = [reps_spec]
    return pl.pallas_call(
        kernel,
        out_shape=jax.ShapeDtypeStruct((n, l, h), reps.dtype),
        grid_spec=pltpu.PrefetchScalarGridSpec(
            num_scalar_prefetch=num_scalar_prefetch,
            grid=(nblk,),
            in_specs=in_specs,
            out_specs=out_spec,
            scratch_shapes=[pltpu.SemaphoreType.DMA(())],
        ),
        compiler_params=pltpu.CompilerParams(
            dimension_semantics=("parallel",),
            vmem_limit_bytes=vmem_limit,
        ),
    )(idx_arg, reps)


# ---------------------------------------------------------------------------
# Public helper: torch.gather(reps, index.expand(..., H), dim=-2) equivalent
# ---------------------------------------------------------------------------
def extract_non_word_piece_reps(reps, nwp_index, *, path="auto",
                                vmem_budget_bytes=None):
    """reps: (N, S, H); nwp_index: (N, L, 1) or (N, L) int -> (N, L, H)."""
    n, s, h = reps.shape
    idx2d = nwp_index.reshape(n, -1)
    l = idx2d.shape[1]
    # torch.gather raises on out-of-range indices; we clamp defensively (valid
    # padding indices such as 0 are unchanged).  NOTE: OOB indices silently
    # gather row S-1 instead of raising.
    idx1d = jnp.clip(idx2d.reshape(-1), 0, s - 1).astype(jnp.int32)

    cfg = _tpu_tuning()
    budget = cfg["vmem_budget"] if vmem_budget_bytes is None else vmem_budget_bytes
    itemsize = jnp.dtype(reps.dtype).itemsize
    chosen = _choose_path(s, l, h, itemsize, reps.dtype, cfg, path)
    # NOTE: the output last dim is the full H, so the writeback stays a single
    # lane-dense store per row when H is a multiple of 128 (true for typical
    # transformer hidden sizes).

    if chosen == "slab":
        bt = _slab_block_rows(n, s, l, h, itemsize, budget, cfg["two_tc"])
        return _extract_slab(reps, idx1d, bt, cfg["vmem_limit"])

    bt = _dma_block_rows(n, s, l, h, itemsize, budget, cfg["two_tc"])
    try:
        # Preferred: blocked SMEM index delivery (SMEM scales with bt*L).
        return _extract_dma(reps, idx1d, bt, cfg["vmem_limit"],
                            idx_is_blocked=True)
    except Exception:
        # Robust fallback: scalar-prefetched flat index array.
        return _extract_dma(reps, idx1d, bt, cfg["vmem_limit"],
                            idx_is_blocked=False)


# ---------------------------------------------------------------------------
# Pure-JAX helpers (pure data movement / reshapes — no Pallas needed)
# ---------------------------------------------------------------------------
def cat_test_and_support(test_item, support_item):
    return jnp.concatenate([test_item, support_item], axis=-1)


def expand_it(item, support_size):
    item = jnp.expand_dims(item, 1)
    shape = list(item.shape)
    shape[1] = support_size
    return jnp.broadcast_to(item, tuple(shape))


def expand_support(item, query_size, support_size):
    item = jnp.expand_dims(item, 0)
    shape = list(item.shape)
    shape[0] = query_size
    expanded = jnp.broadcast_to(item, tuple(shape))
    return expanded.reshape(-1, support_size, shape[-2], shape[-1])


def flatten_input(input_ids, segment_ids, input_mask):
    sent_len = input_ids.shape[-1]
    return (input_ids.reshape(-1, sent_len),
            segment_ids.reshape(-1, sent_len),
            input_mask.reshape(-1, sent_len))


def flatten_index(nwp_index):
    nwp_sent_len = nwp_index.shape[-1]
    return nwp_index.reshape(-1, nwp_sent_len, 1)


# TODO(synk): forward() is abstract in ContextEmbedderBase (raises
# NotImplementedError in PyTorch); only the concrete helpers are implemented.


if __name__ == "__main__":
    key = jax.random.PRNGKey(0)
    k1, k2, k3, k4, k5, k6 = jax.random.split(key, 6)

    # ---- Test A: module-style usage; auto heuristic picks the slab path -----
    batch, support_size = 2, 3
    sent_len, index_len, hidden = 16, 8, 128
    N = batch * support_size

    # Round-trip through bf16 so the one-hot MXU gather is bit-exact no matter
    # how many f32 passes the compiler picks for the matmul.
    reps = jax.random.normal(k1, (N, sent_len, hidden), dtype=jnp.float32)
    reps = reps.astype(jnp.bfloat16).astype(jnp.float32)
    nwp_index = jax.random.randint(
        k2, (batch, support_size, index_len), 0, sent_len, dtype=jnp.int32)
    test_ids = jax.random.randint(
        k3, (batch, support_size, 8), 0, 1000, dtype=jnp.int32)
    support_ids = jax.random.randint(
        k4, (batch, support_size, 8), 0, 1000, dtype=jnp.int32)

    flat_idx = flatten_index(nwp_index)                       # (N, L, 1)
    nwp_reps = extract_non_word_piece_reps(reps, flat_idx)    # (N, L, H)
    jax.block_until_ready(nwp_reps)
    idx_np = np.asarray(flat_idx.reshape(N, index_len))
    ref_a = np.asarray(reps)[np.arange(N)[:, None], idx_np, :]
    np.testing.assert_array_equal(np.asarray(nwp_reps), ref_a)

    # ---- Test B: forced per-row DMA-gather path with a cdiv tail block ------
    N2, S2, L2, H2 = 5, 64, 8, 512
    reps2 = jax.random.normal(k5, (N2, S2, H2), dtype=jnp.float32)
    reps2 = reps2.astype(jnp.bfloat16).astype(jnp.float32)
    idx2 = jax.random.randint(k6, (N2, L2, 1), 0, S2, dtype=jnp.int32)
    out_dma = extract_non_word_piece_reps(
        reps2, idx2, path="dma", vmem_budget_bytes=64 * 1024)  # bt=2 -> 3 steps
    jax.block_until_ready(out_dma)
    ref_b = np.asarray(reps2)[np.arange(N2)[:, None],
                              np.asarray(idx2.reshape(N2, L2)), :]
    np.testing.assert_array_equal(np.asarray(out_dma), ref_b)

    # ---- Test C: forced slab path on the same data (tail + one-hot gather) --
    out_slab = extract_non_word_piece_reps(
        reps2, idx2, path="slab", vmem_budget_bytes=600 * 1024)  # bt=2 -> 3 steps
    jax.block_until_ready(out_slab)
    np.testing.assert_array_equal(np.asarray(out_slab), ref_b)

    # ---- Plain-JAX helpers (pure data movement per the perf review) ---------
    cat_ids = cat_test_and_support(test_ids, support_ids)     # (B, K, 16)
    np.testing.assert_array_equal(
        np.asarray(cat_ids),
        np.asarray(jnp.concatenate([test_ids, support_ids], axis=-1)))
    ids_f, seg_f, mask_f = flatten_input(cat_ids, cat_ids, cat_ids)
    assert ids_f.shape == (N, 16)
    assert expand_it(test_ids[:, 0], support_size).shape == (
        batch, support_size, 8)
    assert expand_support(
        jnp.zeros((support_size, 4, 8)), batch, support_size).shape == (
        batch, support_size, 4, 8)

    print("KERNEL_OK")
</pallas_src>

<mosaic_0001>
module attributes {stable_mosaic.version = 11 : i64} {
  func.func @_gather_slab_kernel(%arg0: i32, %arg1: memref<1x3x8xi32, #tpu.memory_space<vmem>>, %arg2: memref<3x16x128xf32, #tpu.memory_space<vmem>>, %arg3: memref<3x8x128xf32, #tpu.memory_space<vmem>>) attributes {dimension_semantics = [#tpu.dimension_semantics<parallel>], iteration_bounds = array<i64: 2>, scalar_prefetch = 0 : i64, scratch_operands = 0 : i64, tpu.core_type = #tpu.core_type<tc>, window_params = [{transform_indices = @transform_0, window_bounds = array<i64: 1, 3, 8>}, {transform_indices = @transform_1, window_bounds = array<i64: 3, 16, 128>}, {transform_indices = @transform_2, window_bounds = array<i64: 3, 8, 128>}]} {
    %c0 = arith.constant 0 : index
    %c0_0 = arith.constant 0 : index
    %c0_1 = arith.constant 0 : index
    %0 = vector.load %arg1[%c0, %c0_0, %c0_1] : memref<1x3x8xi32, #tpu.memory_space<vmem>>, vector<1x3x8xi32>
    %1 = vector.shape_cast %0 : vector<1x3x8xi32> to vector<3x8xi32>
    %2 = tpu.iota {dimensions = array<i32: 2>} : vector<3x8x16xi32>
    %3 = vector.shape_cast %1 : vector<3x8xi32> to vector<3x8x1xi32>
    %4 = vector.broadcast %3 : vector<3x8x1xi32> to vector<3x8x16xi32>
    %5 = arith.cmpi eq, %4, %2 : vector<3x8x16xi32>
    %6 = arith.extui %5 : vector<3x8x16xi1> to vector<3x8x16xi32>
    %7 = arith.sitofp %6 : vector<3x8x16xi32> to vector<3x8x16xf32>
    %c0_2 = arith.constant 0 : index
    %c0_3 = arith.constant 0 : index
    %c0_4 = arith.constant 0 : index
    %8 = vector.load %arg2[%c0_2, %c0_3, %c0_4] : memref<3x16x128xf32, #tpu.memory_space<vmem>>, vector<3x16x128xf32>
    "tpu.trace_start"() <{level = 10 : i32, message = "bls,bsh->blh"}> : () -> ()
    %cst = arith.constant dense<0.000000e+00> : vector<3x8x128xf32>
    %9 = tpu.matmul %7, %8, %cst {dimension_numbers = #tpu.dot_dimension_numbers<[2], [1], [1], [2], [0, 0, 0, 1, 1, 2], [0], [0]>} : vector<3x8x16xf32>, vector<3x16x128xf32>, vector<3x8x128xf32> -> vector<3x8x128xf32>
    "tpu.trace_stop"() : () -> ()
    %c0_5 = arith.constant 0 : index
    %c0_6 = arith.constant 0 : index
    %c0_7 = arith.constant 0 : index
    %10 = vector.load %arg3[%c0_5, %c0_6, %c0_7] : memref<3x8x128xf32, #tpu.memory_space<vmem>>, vector<3x8x128xf32>
    tpu.vector_store %arg3[%c0_5, %c0_6, %c0_7], %9 {strides = array<i32>} : memref<3x8x128xf32, #tpu.memory_space<vmem>>, vector<3x8x128xf32>,
    return
  }
  func.func @transform_0(%arg0: i32) -> (i32, i32, i32) {
    %c0_i32 = arith.constant 0 : i32
    %c0_i32_0 = arith.constant 0 : i32
    %c0_i32_1 = arith.constant 0 : i32
    return %arg0, %c0_i32, %c0_i32_0 : i32, i32, i32
  }
  func.func @transform_1(%arg0: i32) -> (i32, i32, i32) {
    %c0_i32 = arith.constant 0 : i32
    %c0_i32_0 = arith.constant 0 : i32
    %c0_i32_1 = arith.constant 0 : i32
    return %arg0, %c0_i32, %c0_i32_0 : i32, i32, i32
  }
  func.func @transform_2(%arg0: i32) -> (i32, i32, i32) {
    %c0_i32 = arith.constant 0 : i32
    %c0_i32_0 = arith.constant 0 : i32
    %c0_i32_1 = arith.constant 0 : i32
    return %arg0, %c0_i32, %c0_i32_0 : i32, i32, i32
  }
}

</mosaic_0001>

<llo_original>
// kernel: tpu_custom_call.1
$region0: #{tpu_custom_call.1}
  #allocation0 [shape = 'u32[]', space=smem, size = 0x4, offset = 0x4, fixed_abs, tag = 'smem constant byte address 0x4 - core index']
  #allocation1 [shape = 'u32[72,128]{1,0:T(1,128)}', space=vmem, size = 0x9000, scoped, tag = 'internal scratch']
  %s0 = inlined_call_operand.vmem [shape: s32[2,3,8], index: 0, kind: input, shape index: {}]
  %s1 = inlined_call_operand.hbm [shape: f32[6,16,128], index: 1, kind: input, shape index: {}]
  %s2 = inlined_call_operand.hbm [shape: f32[6,8,128], index: 2, kind: output, shape index: {}]
  %s3 = sld [smem:[#allocation0]]
  $region45: #{tpu_custom_call.1} parent=0
    _
  %s5 = ssub.s32 1, %s3
  %s6 = scalar_select 0, %s5, %s3
  $region1: #{tpu_custom_call.1} parent=0
    #allocation2 [shape = 'u8[49152]{0}', space=vmem, size = 0xc000, scoped, tag = 'input window, operand 1']
    #allocation3 [shape = 's32[2]{0}', space=sflag, size = 0x8, scoped, tag = 'scoped memory for tpu_custom_call.1']
    #allocation4 [shape = 's32[2]{0}', space=sflag, size = 0x8, scoped, tag = 'scoped memory for tpu_custom_call.1']
    #allocation5 [shape = 'u8[24576]{0}', space=vmem, size = 0x6000, scoped, tag = 'output window, operand 0']
    %7 = vsyncpa [#allocation3], 0
    %s8 = scalar_lea.sflag [#allocation3], 1
    %9 = vsyncpa %s8, 0
    %10 = vsyncpa [#allocation4], 0
    %s11 = scalar_lea.sflag [#allocation4], 1
    %12 = vsyncpa %s11, 0
    loop: start=0, step=1, limit=4
    $region2: #{tpu_custom_call.1} parent=1 // loop_pre_header
      _
    $region3: #{tpu_custom_call.1} parent=1 // loop_header
      %s14 = sphi 0, %s18
      %p15 = scmp.ge.s32.totalorder %s14, 4
      %s24 = sphi 0, %s26
      %s27 = sphi 0, %s24
      %s28 = sphi 0, %s27
      %s44 = sphi 0, %s28
      %s50 = sphi 0, %s52
      %s53 = sphi 0, %s50
      %s54 = sphi 0, %s53
      %s70 = sphi 0, %s54
      %s76 = sphi 0, %s78
      %s79 = sphi 0, %s76
      %s80 = sphi 0, %s79
      %s96 = sphi 0, %s80
    $region4: #{tpu_custom_call.1} parent=1 // loop_header_branch
      %17 = sbr.rel (%p15) target = $region8
    $region5: #{tpu_custom_call.1} parent=1 // loop_body
      %s19 = ssub.s32 %s14, 1
      %s20 = ssub.s32 %s14, 2
      %s21 = sadd.s32 %s14, 1
      %s22 = ssub.s32 %s14, %s21
      %p23 = scmp.eq.s32.totalorder %s22, 0
      %s25 = sadd.s32 %s24, 1
      %s26 = scalar_select %p23, %s24, %s25
      %p29 = pneg %p23
      %p30 = scmp.eq.s32.totalorder %s14, 1
      %p31 = por %p29, %p30
      %p32 = scmp.ne.s32.totalorder %s24, %s27
      %p33 = scmp.eq.s32.totalorder %s14, 0
      %p34 = por %p32, %p33
      %p35 = scmp.ne.s32.totalorder %s24, %s27
      %p36 = scmp.eq.s32.totalorder %s19, 1
      %p37 = por %p35, %p36
      %p38 = scmp.ne.s32.totalorder %s27, %s28
      %p39 = scmp.eq.s32.totalorder %s19, 0
      %p40 = por %p38, %p39
      %p41 = scmp.ne.s32.totalorder %s27, %s28
      %p42 = scmp.eq.s32.totalorder %s20, 1
      %p43 = por %p41, %p42
      %p45 = scmp.ne.s32.totalorder %s28, %s44
      %p46 = scmp.eq.s32.totalorder %s20, 0
      %p47 = por %p45, %p46
      %s48 = ssub.s32 %s14, %s21
      %p49 = scmp.eq.s32.totalorder %s48, 0
      %s51 = sadd.s32 %s50, 1
      %s52 = scalar_select %p49, %s50, %s51
      %p55 = pneg %p49
      %p56 = scmp.eq.s32.totalorder %s14, 1
      %p57 = por %p55, %p56
      %p58 = scmp.ne.s32.totalorder %s50, %s53
      %p59 = scmp.eq.s32.totalorder %s14, 0
      %p60 = por %p58, %p59
      %p61 = scmp.ne.s32.totalorder %s50, %s53
      %p62 = scmp.eq.s32.totalorder %s19, 1
      %p63 = por %p61, %p62
      %p64 = scmp.ne.s32.totalorder %s53, %s54
      %p65 = scmp.eq.s32.totalorder %s19, 0
      %p66 = por %p64, %p65
      %p67 = scmp.ne.s32.totalorder %s53, %s54
      %p68 = scmp.eq.s32.totalorder %s20, 1
      %p69 = por %p67, %p68
      %p71 = scmp.ne.s32.totalorder %s54, %s70
      %p72 = scmp.eq.s32.totalorder %s20, 0
      %p73 = por %p71, %p72
      %s74 = ssub.s32 %s14, %s21
      %p75 = scmp.eq.s32.totalorder %s74, 0
      %s77 = sadd.s32 %s76, 1
      %s78 = scalar_select %p75, %s76, %s77
      %p81 = pneg %p75
      %p82 = scmp.eq.s32.totalorder %s14, 1
      %p83 = por %p81, %p82
      %p84 = scmp.ne.s32.totalorder %s76, %s79
      %p85 = scmp.eq.s32.totalorder %s14, 0
      %p86 = por %p84, %p85
      %p87 = scmp.ne.s32.totalorder %s76, %s79
      %p88 = scmp.eq.s32.totalorder %s19, 1
      %p89 = por %p87, %p88
      %p90 = scmp.ne.s32.totalorder %s79, %s80
      %p91 = scmp.eq.s32.totalorder %s19, 0
      %p92 = por %p90, %p91
      %p93 = scmp.ne.s32.totalorder %s79, %s80
      %p94 = scmp.eq.s32.totalorder %s20, 1
      %p95 = por %p93, %p94
      %p97 = scmp.ne.s32.totalorder %s80, %s96
      %p98 = scmp.eq.s32.totalorder %s20, 0
      %p99 = por %p97, %p98
      %p100 = scmp.le.s32.totalorder 1, %s14
      %p101 = scmp.lt.s32.totalorder %s14, 3
      %p102 = pnand %p100, %p101
      %p103 = pneg %p102
      // Predicated region
      $region9: #{tpu_custom_call.1} parent=5 // pred_check
        _
      $region10: #{tpu_custom_call.1} parent=5 // pred_check_branch
        %105 = sbr.rel (%p102) target = $region12
      $region11: #{tpu_custom_call.1} parent=5 // pred_region
        %s106 = ssub.s32 %s14, 1
      $region12: #{tpu_custom_call.1} parent=5 // pred_fallthru
        _
      %p107 = scmp.lt.s32.totalorder %s14, 2
      // Predicated region
      $region13: #{tpu_custom_call.1} parent=5 // pred_check
        %p108 = pneg %p107
      $region14: #{tpu_custom_call.1} parent=5 // pred_check_branch
        %110 = sbr.rel (%p108) target = $region16
      $region15: #{tpu_custom_call.1} parent=5 // pred_region
        // Predicated region
        $region17: #{tpu_custom_call.1} parent=15 // pred_check
          %p111 = pneg %p34
        $region18: #{tpu_custom_call.1} parent=15 // pred_check_branch
          %113 = sbr.rel (%p111) target = $region20
        $region19: #{tpu_custom_call.1} parent=15 // pred_region
          %p114 = scmp.lt.s32.totalorder %s14, 1
          %s115 = scalar_select %p114, %s14, 1
          %s116 = smul.addr %s115, 4
          %s117 = scalar_lea.vmem %s0, %s116
        $region20: #{tpu_custom_call.1} parent=15 // pred_fallthru
          _
        // Predicated region
        $region21: #{tpu_custom_call.1} parent=15 // pred_check
          %p118 = pneg %p60
        $region22: #{tpu_custom_call.1} parent=15 // pred_check_branch
          %120 = sbr.rel (%p118) target = $region24
        $region23: #{tpu_custom_call.1} parent=15 // pred_region
          %s121 = sand.u32 %s50, 1
          %s122 = scalar_lea.sflag [#allocation3], %s121
          %s123 = sand.u32 %s50, 1
          %s124 = smul.addr %s123, 48
          %s125 = scalar_lea.vmem [#allocation2], %s124
          %s126 = smul.u32 3, %s14
          %128 = vsyncadd %s122, 0
          %s129 = smul.addr %s126, 2
          %s130 = smul.addr %s129, 8
          %s131 = scalar_lea.hbm %s1, %s130
          %s132 = sshll.u32 %s131, 4
          %s133 = int_to_ptr.hbm [resolvable:$true] %s132
          %s134 = sshll.u32 %s125, 4
          %s135 = int_to_ptr.vmem [resolvable:$true] %s134
          %140 = dma.hbm_to_vmem [thread:$0]  %s133, 768, %s135, %s122, 128, 128, 8
        $region24: #{tpu_custom_call.1} parent=15 // pred_fallthru
          _
      $region16: #{tpu_custom_call.1} parent=5 // pred_fallthru
        _
      %p141 = scmp.le.s32.totalorder 1, %s14
      %p142 = scmp.lt.s32.totalorder %s14, 3
      %p143 = pnand %p141, %p142
      %p144 = pneg %p143
      // Predicated region
      $region25: #{tpu_custom_call.1} parent=5 // pred_check
        _
      $region26: #{tpu_custom_call.1} parent=5 // pred_check_branch
        %146 = sbr.rel (%p143) target = $region28
      $region27: #{tpu_custom_call.1} parent=5 // pred_region
        %s147 = ssub.s32 %s14, 1
        %s148 = sand.u32 %s53, 1
        %s149 = scalar_lea.sflag [#allocation3], %s148
        %s150 = sand.u32 %s53, 1
        %s151 = smul.addr %s150, 48
        %s152 = scalar_lea.vmem [#allocation2], %s151
        // Predicated region
        $region29: #{tpu_custom_call.1} parent=27 // pred_check
          %p153 = pneg %p66
        $region30: #{tpu_custom_call.1} parent=27 // pred_check_branch
          %155 = sbr.rel (%p153) target = $region32
        $region31: #{tpu_custom_call.1} parent=27 // pred_region
          %157 = dma.done %s149, 768
        $region32: #{tpu_custom_call.1} parent=27 // pred_fallthru
          _
        %p158 = scmp.lt.s32.totalorder %s19, 1
        %s159 = scalar_select %p158, %s19, 1
        %s160 = smul.addr %s159, 4
        %s161 = scalar_lea.vmem %s0, %s160
        %p162 = pneg %p40
        %p163 = pneg %p37
        %s164 = sand.u32 %s53, 1
        %s165 = scalar_lea.sflag [#allocation3], %s164
        %s166 = sand.u32 %s53, 1
        %s167 = smul.addr %s166, 48
        %s168 = scalar_lea.vmem [#allocation2], %s167
        %p169 = pneg %p66
        %p170 = pneg %p63
        %p171 = pneg %p92
        %p172 = pneg %p89
        %s173 = sand.u32 %s79, 1
        %s174 = scalar_lea.sflag [#allocation4], %s173
        %s175 = sand.u32 %s79, 1
        %s176 = smul.addr %s175, 24
        %s177 = scalar_lea.vmem [#allocation5], %s176
        %p178 = scmp.lt.s32.totalorder %s19, 1
        %s179 = scalar_select %p178, %s19, 1
        %s180 = smul.addr %s179, 4
        %s181 = scalar_lea.vmem %s0, %s180
        %s182 = smul.u32 3, %s19
        %s183 = smul.u32 3, %s19
        %v184 = vld [vmem:[%s181] sm:$0x7]
        %v185 = vlaneseq
        %v186 = vand.u32 %v185, 127
        %v187 = vperm.slane %v184, 0
        %v188 = vlaneseq
        %v189 = vshrl.u32 %v188, 7
        %191 = vset.pattern.permute.xlu0 %v189
        %192 = vperm.xlu0 %191, %v187
        %v193 = vpop.permute.xlu0 %192
        %v194 = vperm.slane %v184, 1
        %v195 = vlaneseq
        %v196 = vshrl.u32 %v195, 7
        %198 = vset.pattern.permute.xlu0 %v196
        %199 = vperm.xlu0 %198, %v194
        %v200 = vpop.permute.xlu0 %199
        %v201 = vperm.slane %v184, 2
        %v202 = vlaneseq
        %v203 = vshrl.u32 %v202, 7
        %205 = vset.pattern.permute.xlu0 %v203
        %206 = vperm.xlu0 %205, %v201
        %v207 = vpop.permute.xlu0 %206
        %vm208 = vcmp.eq.s32.totalorder %v193, %v186
        %vm209 = vcmp.eq.s32.totalorder %v200, %v186
        %vm210 = vcmp.eq.s32.totalorder %v207, %v186
        %v211 = vsel %vm208, 1, 0
        %v212 = vsel %vm209, 1, 0
        %v213 = vsel %vm210, 1, 0
        %v214 = vcvt.s32.f32 %v211
        %v215 = vcvt.s32.f32 %v212
        %v216 = vcvt.s32.f32 %v213
        %v217 = vld [vmem:[%s152] sm:$0xff]
        %v218 = vld [vmem:[%s152 + $0x8] sm:$0xff]
        %v219 = vld [vmem:[%s152 + $0x10] sm:$0xff]
        %v220 = vld [vmem:[%s152 + $0x18] sm:$0xff]
        %v221 = vld [vmem:[%s152 + $0x20] sm:$0xff]
        %v222 = vld [vmem:[%s152 + $0x28] sm:$0xff]
        %vm223 = vcmask 130048
        %v225 = vsel %vm223, %v214, 0
        %227 = vmatpush.msra.mxu0 0.0
        %228 = vmatpush.msra.mxu0 0.0
        %229 = vmatpush.msra.mxu0 0.0
        %230 = vmatpush.msra.mxu0 0.0
        %231 = vmatpush.msra.mxu0 0.0
        %232 = vmatpush.msra.mxu0 0.0
        %233 = vmatpush.msra.mxu0 0.0
        %234 = vmatpush.msra.mxu0 0.0
        %235 = vmatpush.msra.mxu0 0.0
        %236 = vmatpush.msra.mxu0 0.0
        %237 = vmatpush.msra.mxu0 0.0
        %238 = vmatpush.msra.mxu0 0.0
        %239 = vmatpush.msra.mxu0 0.0
        %240 = vmatpush.msra.mxu0 0.0
        %241 = vmatpush.msra.mxu0 %v218
        %242 = vmatpush.msra.mxu0 %v217
        %243 = vmatmul.f32.gmra.mxu0 %v225
        %v244 = vpop.f32.mrf.mxu0
        %v245 = vadd.f32 0.0, %v244
        %246 = vdwg.mxu0
        %v248 = vsel %vm223, %v215, 0
        %250 = vmatpush.msra.mxu0 0.0
        %251 = vmatpush.msra.mxu0 0.0
        %252 = vmatpush.msra.mxu0 0.0
        %253 = vmatpush.msra.mxu0 0.0
        %254 = vmatpush.msra.mxu0 0.0
        %255 = vmatpush.msra.mxu0 0.0
        %256 = vmatpush.msra.mxu0 0.0
        %257 = vmatpush.msra.mxu0 0.0
        %258 = vmatpush.msra.mxu0 0.0
        %259 = vmatpush.msra.mxu0 0.0
        %260 = vmatpush.msra.mxu0 0.0
        %261 = vmatpush.msra.mxu0 0.0
        %262 = vmatpush.msra.mxu0 0.0
        %263 = vmatpush.msra.mxu0 0.0
        %264 = vmatpush.msra.mxu0 %v220
        %265 = vmatpush.msra.mxu0 %v219
        %266 = vmatmul.f32.gmra.mxu0 %v248
        %v267 = vpop.f32.mrf.mxu0
        %v268 = vadd.f32 0.0, %v267
        %269 = vdwg.mxu0
        %v271 = vsel %vm223, %v216, 0
        %273 = vmatpush.msra.mxu0 0.0
        %274 = vmatpush.msra.mxu0 0.0
        %275 = vmatpush.msra.mxu0 0.0
        %276 = vmatpush.msra.mxu0 0.0
        %277 = vmatpush.msra.mxu0 0.0
        %278 = vmatpush.msra.mxu0 0.0
        %279 = vmatpush.msra.mxu0 0.0
        %280 = vmatpush.msra.mxu0 0.0
        %281 = vmatpush.msra.mxu0 0.0
        %282 = vmatpush.msra.mxu0 0.0
        %283 = vmatpush.msra.mxu0 0.0
        %284 = vmatpush.msra.mxu0 0.0
        %285 = vmatpush.msra.mxu0 0.0
        %286 = vmatpush.msra.mxu0 0.0
        %287 = vmatpush.msra.mxu0 %v222
        %288 = vmatpush.msra.mxu0 %v221
        %289 = vmatmul.f32.gmra.mxu0 %v271
        %v290 = vpop.f32.mrf.mxu0
        %v291 = vadd.f32 0.0, %v290
        %292 = vdwg.mxu0
        %293 = vst [vmem:[%s177] sm:$0xff] %v245
        %294 = vst [vmem:[%s177 + $0x8] sm:$0xff] %v268
        %295 = vst [vmem:[%s177 + $0x10] sm:$0xff] %v291
        %s296 = sand.u32 %s79, 1
        %s297 = scalar_lea.sflag [#allocation4], %s296
        %s298 = sand.u32 %s79, 1
        %s299 = smul.addr %s298, 24
        %s300 = scalar_lea.vmem [#allocation5], %s299
        // Predicated region
        $region33: #{tpu_custom_call.1} parent=27 // pred_check
          %p301 = pneg %p89
        $region34: #{tpu_custom_call.1} parent=27 // pred_check_branch
          %303 = sbr.rel (%p301) target = $region36
        $region35: #{tpu_custom_call.1} parent=27 // pred_region
          %s304 = smul.u32 3, %s19
          %306 = vsyncadd %s297, 0
          %s307 = smul.addr %s304, 8
          %s308 = scalar_lea.hbm %s2, %s307
          %s309 = sshll.u32 %s300, 4
          %s310 = int_to_ptr.vmem [resolvable:$true] %s309
          %s311 = sshll.u32 %s308, 4
          %s312 = int_to_ptr.hbm [resolvable:$true] %s311
          %317 = dma.vmem_to_hbm [thread:$0]  %s310, 384, %s312, %s297, 128, 128, 8
        $region36: #{tpu_custom_call.1} parent=27 // pred_fallthru
          _
      $region28: #{tpu_custom_call.1} parent=5 // pred_fallthru
        _
      %p318 = scmp.le.s32.totalorder 2, %s14
      // Predicated region
      $region37: #{tpu_custom_call.1} parent=5 // pred_check
        %p319 = pneg %p318
      $region38: #{tpu_custom_call.1} parent=5 // pred_check_branch
        %321 = sbr.rel (%p319) target = $region40
      $region39: #{tpu_custom_call.1} parent=5 // pred_region
        %s322 = ssub.s32 %s14, 2
        // Predicated region
        $region41: #{tpu_custom_call.1} parent=39 // pred_check
          %p323 = pneg %p95
        $region42: #{tpu_custom_call.1} parent=39 // pred_check_branch
          %325 = sbr.rel (%p323) target = $region44
        $region43: #{tpu_custom_call.1} parent=39 // pred_region
          %s326 = sand.u32 %s80, 1
          %s327 = scalar_lea.sflag [#allocation4], %s326
          %s328 = sand.u32 %s80, 1
          %s329 = smul.addr %s328, 24
          %s330 = scalar_lea.vmem [#allocation5], %s329
          %332 = dma.done %s327, 384
        $region44: #{tpu_custom_call.1} parent=39 // pred_fallthru
          _
      $region40: #{tpu_custom_call.1} parent=5 // pred_fallthru
        _
    $region6: #{tpu_custom_call.1} parent=1 // loop_footer
      %s18 = sadd.s32 1, %s14
    $region7: #{tpu_custom_call.1} parent=1 // loop_footer_branch
      %13 = sbr.rel target = $region3
    $region8: #{tpu_custom_call.1} parent=1 // loop_exit
      _
    %333 = vsyncpa [#allocation3], 1
    %s334 = scalar_lea.sflag [#allocation3], 1
    %335 = vsyncpa %s334, 1
    %336 = vsyncpa [#allocation4], 1
    %s337 = scalar_lea.sflag [#allocation4], 1
    %338 = vsyncpa %s337, 1

</llo_original>
